<compile_context>
chip_gen: v5e
topology: v5e:2x2
jax: 0.10.0
libtpu: 0.0.40
codegen_flags: <defaults>
</compile_context>

<pallas_src>
import math
from functools import partial

import numpy as np
import jax
import jax.numpy as jnp
from jax.experimental import pallas as pl
from jax.experimental.pallas import tpu as pltpu


def _ln_packed_kernel(x_ref, w_ref, seg_ref, o_ref, *, inv_c, apply_inv_c):
    """Packed path: x_ref (TM, L = P*C) holds P original rows per lane-dense row.

    seg_ref (L, L) bf16 is block-diagonal: seg[r, c] = s iff lanes r and c belong to the
    same C-lane segment (s = 1/C for power-of-two C, else 1).  x @ seg computes every
    per-segment sum AND broadcasts it back across that segment's lanes in a single MXU
    matmul (no XLU relayouts; rides the otherwise-idle MXU slot).
    """
    x = x_ref[...].astype(jnp.float32)
    w = w_ref[...].astype(jnp.float32)
    seg = seg_ref[...]                                   # (L, L) bf16, entries 0 or s

    def seg_mean(v):
        # f32-accurate segmented reduction using two single-pass bf16 dots:
        # v = hi + lo with hi, lo representable in bf16; seg entries are 0 or a power of
        # two (or exactly 1), so products are exact and accumulation is f32 on the MXU.
        hi = v.astype(jnp.bfloat16)
        lo = (v - hi.astype(jnp.float32)).astype(jnp.bfloat16)
        s = (jnp.dot(hi, seg, preferred_element_type=jnp.float32)
             + jnp.dot(lo, seg, preferred_element_type=jnp.float32))
        return s * inv_c if apply_inv_c else s

    mu = seg_mean(x)                                     # (TM, L), lane-broadcast per segment
    xc = x - mu
    var = seg_mean(xc * xc)                              # mean-centred, biased variance
    inv = jax.lax.rsqrt(var + 1e-5)
    o_ref[...] = (x * inv * w).astype(o_ref.dtype)       # bias-free: normalize x, not x - mu


def _ln_plain_kernel(x_ref, w_ref, o_ref):
    """Unpacked path (C already a multiple of 128, or packing not worthwhile)."""
    x = x_ref[...].astype(jnp.float32)
    w = w_ref[...].astype(jnp.float32)
    mu = jnp.mean(x, axis=-1, keepdims=True)
    xc = x - mu
    var = jnp.mean(xc * xc, axis=-1, keepdims=True)
    inv = jax.lax.rsqrt(var + 1e-5)
    o_ref[...] = (x * inv * w).astype(o_ref.dtype)


def biasfree_layernorm(x, weight, *, tile_rows=4096, max_pack_lanes=640):
    """BiasFree LayerNorm over the last axis.  x: (..., C), weight: (C,)."""
    orig_shape = x.shape
    C = orig_shape[-1]
    rows = math.prod(orig_shape[:-1])

    # Lane densification: pack P consecutive rows into L = P*C lanes so L is a multiple
    # of 128 (lane-dense, unmasked vld/vst).  L = lcm(C, 128), bounded to keep the seg
    # matmul cheap and the seg matrix small.
    if C % 128 == 0:
        P, L = 1, C
    else:
        L = (C * 128) // math.gcd(C, 128)                # lcm(C, 128)
        if L <= max_pack_lanes:
            P = L // C
        else:
            P, L = 1, C                                  # fallback: lane-sparse last dim
            # TODO(synk): for odd C with huge lcm, pad the channel dim to a multiple of 128
            # in the wrapper to regain lane-dense stores (rare for this module).

    x2d = x.reshape(rows, C)
    # Pad only to a multiple of P (tiny: < P rows), and to one full (8, L) tile minimum for
    # very small inputs -- never the old full num_blocks*tm*P padding, so no extra HBM pass.
    rows_p = max(pl.cdiv(rows, P) * P, 8 * P)
    if rows_p != rows:
        x2d = jnp.pad(x2d, ((0, rows_p - rows), (0, 0)))
    R0 = rows_p // P                                     # packed rows (>= 8)
    x_packed = x2d.reshape(R0, L)

    # Tile size: multiple of 8 packed rows, ~2 MiB of f32 working set per block, capped at
    # ~half the rows so the grid has >= 2 blocks (keeps both v7x TensorCores busy).
    budget = max(8, (2 * 1024 * 1024 // (L * 4)) // 8 * 8)
    half = max(8, ((R0 + 1) // 2 + 7) // 8 * 8)
    tm = max(8, min(tile_rows, budget, half))
    num_blocks = pl.cdiv(R0, tm)

    if P > 1:
        # Weight tiled across the P packed rows: lane l uses weight[l % C].
        w_in = jnp.tile(weight.reshape(1, C), (1, P))
        # Block-diagonal segment matrix, built once on host (constant, VMEM-resident input).
        pow2 = (C & (C - 1)) == 0                        # 1/C exact in bf16 only then
        seg_ids = np.arange(L) // C
        seg_np = (seg_ids[:, None] == seg_ids[None, :]).astype(np.float32)
        if pow2:
            seg_np *= 1.0 / C
        seg = jnp.asarray(seg_np, dtype=jnp.bfloat16)
        kernel = partial(_ln_packed_kernel, inv_c=1.0 / C, apply_inv_c=not pow2)
        in_specs = [
            pl.BlockSpec((tm, L), lambda i: (i, 0)),
            pl.BlockSpec((1, L), lambda i: (0, 0)),
            pl.BlockSpec((L, L), lambda i: (0, 0)),
        ]
        operands = (x_packed, w_in, seg)
    else:
        w_in = weight.reshape(1, C)
        kernel = _ln_plain_kernel
        in_specs = [
            pl.BlockSpec((tm, L), lambda i: (i, 0)),
            pl.BlockSpec((1, L), lambda i: (0, 0)),
        ]
        operands = (x_packed, w_in)

    out_packed = pl.pallas_call(
        kernel,
        out_shape=jax.ShapeDtypeStruct((R0, L), x.dtype),
        grid_spec=pltpu.PrefetchScalarGridSpec(
            num_scalar_prefetch=0,
            grid=(num_blocks,),
            in_specs=in_specs,
            out_specs=pl.BlockSpec((tm, L), lambda i: (i, 0)),
        ),
        compiler_params=pltpu.CompilerParams(
            dimension_semantics=("parallel",),
            vmem_limit_bytes=48 * 1024 * 1024,
        ),
    )(*operands)

    out2d = out_packed.reshape(rows_p, C)
    if rows_p != rows:
        out2d = out2d[:rows]
    return out2d.reshape(orig_shape)


def _reference(x, weight):
    x32 = x.astype(jnp.float32)
    var = jnp.var(x32, axis=-1, keepdims=True)           # biased (ddof=0), mean-centred
    out = x32 / jnp.sqrt(var + 1e-5) * weight.astype(jnp.float32)
    return out.astype(x.dtype)


def _check(x, weight, atol, rtol, tag):
    out = jax.block_until_ready(biasfree_layernorm(x, weight))
    ref = _reference(x, weight)
    assert out.shape == x.shape and out.dtype == x.dtype, tag
    ok = jnp.allclose(out.astype(jnp.float32), ref.astype(jnp.float32), atol=atol, rtol=rtol)
    assert bool(ok), f"mismatch vs reference: {tag}"


if __name__ == "__main__":
    key = jax.random.PRNGKey(0)
    k1, k2, k3, k4, k5 = jax.random.split(key, 5)

    # Primary case (module usage: tokens (B, H*W, C), normalized over C).
    B, N, C = 2, 64, 32
    x = jax.random.normal(k1, (B, N, C), dtype=jnp.float32)
    weight = jnp.ones((C,), dtype=jnp.float32)            # module __init__: weight = ones(C)
    _check(x, weight, atol=2e-3, rtol=2e-3, tag="f32 C=32 ones-weight")

    # Non-trivial weight exercises the lane-tiled weight path.
    w_rand = jax.random.uniform(k2, (C,), dtype=jnp.float32, minval=0.5, maxval=1.5)
    _check(x, w_rand, atol=2e-3, rtol=2e-3, tag="f32 C=32 random-weight")

    # Row count not divisible by the packing factor -> small-pad path.
    x_odd = jax.random.normal(k3, (1, 13, C), dtype=jnp.float32)
    _check(x_odd, w_rand, atol=2e-3, rtol=2e-3, tag="f32 padded rows")

    # Large DC offset (stress the mean-centred variance path).
    _check(x + 10.0, w_rand, atol=2e-3, rtol=2e-3, tag="f32 C=32 DC offset")

    # bf16 I/O (halves HBM traffic for a bandwidth-bound kernel).
    _check(x.astype(jnp.bfloat16), w_rand, atol=3e-2, rtol=3e-2, tag="bf16 C=32")

    # Channel count that does not divide 128 -> lcm packing path (L=384, P=8).
    x48 = jax.random.normal(k4, (2, 32, 48), dtype=jnp.float32)
    w48 = jax.random.uniform(k5, (48,), dtype=jnp.float32, minval=0.5, maxval=1.5)
    _check(x48, w48, atol=2e-3, rtol=2e-3, tag="f32 C=48 (lcm packing)")

    # Wide-channel case (C multiple of 128 -> no packing, plain lane reduction path).
    x_wide = jax.random.normal(k1, (2, 16, 256), dtype=jnp.float32)
    w_wide = jnp.ones((256,), dtype=jnp.float32)
    _check(x_wide, w_wide, atol=2e-3, rtol=2e-3, tag="f32 C=256 (no packing)")

    print("KERNEL_OK")
</pallas_src>

<mosaic_0001>
module attributes {stable_mosaic.version = 11 : i64} {
  func.func @_ln_packed_kernel(%arg0: i32, %arg1: memref<16x128xf32, #tpu.memory_space<vmem>>, %arg2: memref<1x128xf32, #tpu.memory_space<vmem>>, %arg3: memref<128x128xbf16, #tpu.memory_space<vmem>>, %arg4: memref<16x128xf32, #tpu.memory_space<vmem>>) attributes {dimension_semantics = [#tpu.dimension_semantics<parallel>], iteration_bounds = array<i64: 2>, scalar_prefetch = 0 : i64, scratch_operands = 0 : i64, tpu.core_type = #tpu.core_type<tc>, window_params = [{transform_indices = @transform_0, window_bounds = array<i64: 16, 128>}, {pipeline_mode = #tpu.pipeline_mode<synchronous>, transform_indices = @transform_1, window_bounds = array<i64: 1, 128>}, {pipeline_mode = #tpu.pipeline_mode<synchronous>, transform_indices = @transform_2, window_bounds = array<i64: 128, 128>}, {transform_indices = @transform_3, window_bounds = array<i64: 16, 128>}]} {
    %c0 = arith.constant 0 : index
    %c0_0 = arith.constant 0 : index
    %0 = vector.load %arg1[%c0, %c0_0] : memref<16x128xf32, #tpu.memory_space<vmem>>, vector<16x128xf32>
    %c0_1 = arith.constant 0 : index
    %c0_2 = arith.constant 0 : index
    %1 = vector.load %arg2[%c0_1, %c0_2] : memref<1x128xf32, #tpu.memory_space<vmem>>, vector<1x128xf32>
    %c0_3 = arith.constant 0 : index
    %c0_4 = arith.constant 0 : index
    %2 = vector.load %arg3[%c0_3, %c0_4] : memref<128x128xbf16, #tpu.memory_space<vmem>>, vector<128x128xbf16>
    %3 = arith.truncf %0 : vector<16x128xf32> to vector<16x128xbf16>
    %4 = arith.extf %3 : vector<16x128xbf16> to vector<16x128xf32>
    %5 = arith.subf %0, %4 : vector<16x128xf32>
    %6 = arith.truncf %5 : vector<16x128xf32> to vector<16x128xbf16>
    %cst = arith.constant dense<0.000000e+00> : vector<16x128xf32>
    %7 = tpu.matmul %3, %2, %cst {dimension_numbers = #tpu.dot_dimension_numbers<[1], [0], [0], [1], [0, 0, 1, 1], [], []>} : vector<16x128xbf16>, vector<128x128xbf16>, vector<16x128xf32> -> vector<16x128xf32>
    %cst_5 = arith.constant dense<0.000000e+00> : vector<16x128xf32>
    %8 = tpu.matmul %6, %2, %cst_5 {dimension_numbers = #tpu.dot_dimension_numbers<[1], [0], [0], [1], [0, 0, 1, 1], [], []>} : vector<16x128xbf16>, vector<128x128xbf16>, vector<16x128xf32> -> vector<16x128xf32>
    %9 = arith.addf %7, %8 : vector<16x128xf32>
    %10 = arith.subf %0, %9 : vector<16x128xf32>
    %11 = arith.mulf %10, %10 : vector<16x128xf32>
    %12 = arith.truncf %11 : vector<16x128xf32> to vector<16x128xbf16>
    %13 = arith.extf %12 : vector<16x128xbf16> to vector<16x128xf32>
    %14 = arith.subf %11, %13 : vector<16x128xf32>
    %15 = arith.truncf %14 : vector<16x128xf32> to vector<16x128xbf16>
    %cst_6 = arith.constant dense<0.000000e+00> : vector<16x128xf32>
    %16 = tpu.matmul %12, %2, %cst_6 {dimension_numbers = #tpu.dot_dimension_numbers<[1], [0], [0], [1], [0, 0, 1, 1], [], []>} : vector<16x128xbf16>, vector<128x128xbf16>, vector<16x128xf32> -> vector<16x128xf32>
    %cst_7 = arith.constant dense<0.000000e+00> : vector<16x128xf32>
    %17 = tpu.matmul %15, %2, %cst_7 {dimension_numbers = #tpu.dot_dimension_numbers<[1], [0], [0], [1], [0, 0, 1, 1], [], []>} : vector<16x128xbf16>, vector<128x128xbf16>, vector<16x128xf32> -> vector<16x128xf32>
    %18 = arith.addf %16, %17 : vector<16x128xf32>
    %cst_8 = arith.constant 9.99999974E-6 : f32
    %19 = vector.broadcast %cst_8 : f32 to vector<16x128xf32>
    %20 = arith.addf %18, %19 : vector<16x128xf32>
    %21 = math.rsqrt %20 : vector<16x128xf32>
    %22 = arith.mulf %0, %21 : vector<16x128xf32>
    %23 = vector.broadcast %1 : vector<1x128xf32> to vector<16x128xf32>
    %24 = arith.mulf %22, %23 : vector<16x128xf32>
    %c0_9 = arith.constant 0 : index
    %c0_10 = arith.constant 0 : index
    %25 = vector.load %arg4[%c0_9, %c0_10] : memref<16x128xf32, #tpu.memory_space<vmem>>, vector<16x128xf32>
    tpu.vector_store %arg4[%c0_9, %c0_10], %24 {strides = array<i32>} : memref<16x128xf32, #tpu.memory_space<vmem>>, vector<16x128xf32>,
    return
  }
  func.func @transform_0(%arg0: i32) -> (i32, i32) {
    %c0_i32 = arith.constant 0 : i32
    %c0_i32_0 = arith.constant 0 : i32
    return %arg0, %c0_i32 : i32, i32
  }
  func.func @transform_1(%arg0: i32) -> (i32, i32) {
    %c0_i32 = arith.constant 0 : i32
    %c0_i32_0 = arith.constant 0 : i32
    %c0_i32_1 = arith.constant 0 : i32
    return %c0_i32, %c0_i32_0 : i32, i32
  }
  func.func @transform_2(%arg0: i32) -> (i32, i32) {
    %c0_i32 = arith.constant 0 : i32
    %c0_i32_0 = arith.constant 0 : i32
    %c0_i32_1 = arith.constant 0 : i32
    return %c0_i32, %c0_i32_0 : i32, i32
  }
  func.func @transform_3(%arg0: i32) -> (i32, i32) {
    %c0_i32 = arith.constant 0 : i32
    %c0_i32_0 = arith.constant 0 : i32
    return %arg0, %c0_i32 : i32, i32
  }
}

</mosaic_0001>

<llo_original>
// kernel: tpu_custom_call.1
$region0: #{tpu_custom_call.1}
  #allocation0 [shape = 'u32[]', space=smem, size = 0x4, offset = 0x4, fixed_abs, tag = 'smem constant byte address 0x4 - core index']
  #allocation1 [shape = 'u32[72,128]{1,0:T(1,128)}', space=vmem, size = 0x9000, scoped, tag = 'internal scratch']
  %s0 = inlined_call_operand.hbm [shape: f32[32,128], index: 0, kind: input, shape index: {}]
  %s1 = inlined_call_operand.hbm [shape: f32[1,128], index: 1, kind: input, shape index: {}]
  %s2 = inlined_call_operand.hbm [shape: bf16[128,128], index: 2, kind: input, shape index: {}]
  %s3 = inlined_call_operand.hbm [shape: f32[32,128], index: 3, kind: output, shape index: {}]
  %s4 = sld [smem:[#allocation0]]
  $region57: #{tpu_custom_call.1} parent=0
    _
  %s6 = ssub.s32 1, %s4
  %s7 = scalar_select 0, %s6, %s4
  $region1: #{tpu_custom_call.1} parent=0
    #allocation2 [shape = 'u8[16384]{0}', space=vmem, size = 0x4000, scoped, tag = 'input window, operand 0']
    #allocation3 [shape = 's32[2]{0}', space=sflag, size = 0x8, scoped, tag = 'scoped memory for tpu_custom_call.1']
    #allocation4 [shape = 's32[2]{0}', space=sflag, size = 0x8, scoped, tag = 'scoped memory for tpu_custom_call.1']
    #allocation5 [shape = 'u8[512]{0}', space=vmem, size = 0x400, scoped, tag = 'input window, operand 1, single buffered']
    #allocation6 [shape = 's32[1]{0}', space=sflag, size = 0x4, scoped, tag = 'scoped memory for tpu_custom_call.1']
    #allocation7 [shape = 'u8[32768]{0}', space=vmem, size = 0x8000, scoped, tag = 'input window, operand 2, single buffered']
    #allocation8 [shape = 'u8[16384]{0}', space=vmem, size = 0x4000, scoped, tag = 'output window, operand 0']
    %8 = vsyncpa [#allocation3], 0
    %s9 = scalar_lea.sflag [#allocation3], 1
    %10 = vsyncpa %s9, 0
    %11 = vsyncpa [#allocation6], 0
    %12 = vsyncpa [#allocation4], 0
    %s13 = scalar_lea.sflag [#allocation4], 1
    %14 = vsyncpa %s13, 0
    loop: start=0, step=1, limit=4
    $region2: #{tpu_custom_call.1} parent=1 // loop_pre_header
      _
    $region3: #{tpu_custom_call.1} parent=1 // loop_header
      %s16 = sphi 0, %s20
      %p17 = scmp.ge.s32.totalorder %s16, 4
      %s26 = sphi 0, %s28
      %s29 = sphi 0, %s26
      %s30 = sphi 0, %s29
      %s46 = sphi 0, %s30
      %s50 = sphi 0, %s50
      %s52 = sphi 0, %s50
      %s53 = sphi 0, %s52
      %s67 = sphi 0, %s53
      %s71 = sphi 0, %s71
      %s73 = sphi 0, %s71
      %s74 = sphi 0, %s73
      %s88 = sphi 0, %s74
      %s94 = sphi 0, %s96
      %s97 = sphi 0, %s94
      %s98 = sphi 0, %s97
      %s114 = sphi 0, %s98
    $region4: #{tpu_custom_call.1} parent=1 // loop_header_branch
      %19 = sbr.rel (%p17) target = $region8
    $region5: #{tpu_custom_call.1} parent=1 // loop_body
      %s21 = ssub.s32 %s16, 1
      %s22 = ssub.s32 %s16, 2
      %s23 = sadd.s32 %s16, 1
      %s24 = ssub.s32 %s16, %s23
      %p25 = scmp.eq.s32.totalorder %s24, 0
      %s27 = sadd.s32 %s26, 1
      %s28 = scalar_select %p25, %s26, %s27
      %p31 = pneg %p25
      %p32 = scmp.eq.s32.totalorder %s16, 1
      %p33 = por %p31, %p32
      %p34 = scmp.ne.s32.totalorder %s26, %s29
      %p35 = scmp.eq.s32.totalorder %s16, 0
      %p36 = por %p34, %p35
      %p37 = scmp.ne.s32.totalorder %s26, %s29
      %p38 = scmp.eq.s32.totalorder %s21, 1
      %p39 = por %p37, %p38
      %p40 = scmp.ne.s32.totalorder %s29, %s30
      %p41 = scmp.eq.s32.totalorder %s21, 0
      %p42 = por %p40, %p41
      %p43 = scmp.ne.s32.totalorder %s29, %s30
      %p44 = scmp.eq.s32.totalorder %s22, 1
      %p45 = por %p43, %p44
      %p47 = scmp.ne.s32.totalorder %s30, %s46
      %p48 = scmp.eq.s32.totalorder %s22, 0
      %p49 = por %p47, %p48
      %s51 = sadd.s32 %s50, 1
      %p54 = scmp.eq.s32.totalorder %s16, 1
      %p55 = scmp.ne.s32.totalorder %s50, %s52
      %p56 = scmp.eq.s32.totalorder %s16, 0
      %p57 = por %p55, %p56
      %p58 = scmp.ne.s32.totalorder %s50, %s52
      %p59 = scmp.eq.s32.totalorder %s21, 1
      %p60 = por %p58, %p59
      %p61 = scmp.ne.s32.totalorder %s52, %s53
      %p62 = scmp.eq.s32.totalorder %s21, 0
      %p63 = por %p61, %p62
      %p64 = scmp.ne.s32.totalorder %s52, %s53
      %p65 = scmp.eq.s32.totalorder %s22, 1
      %p66 = por %p64, %p65
      %p68 = scmp.ne.s32.totalorder %s53, %s67
      %p69 = scmp.eq.s32.totalorder %s22, 0
      %p70 = por %p68, %p69
      %s72 = sadd.s32 %s71, 1
      %p75 = scmp.eq.s32.totalorder %s16, 1
      %p76 = scmp.ne.s32.totalorder %s71, %s73
      %p77 = scmp.eq.s32.totalorder %s16, 0
      %p78 = por %p76, %p77
      %p79 = scmp.ne.s32.totalorder %s71, %s73
      %p80 = scmp.eq.s32.totalorder %s21, 1
      %p81 = por %p79, %p80
      %p82 = scmp.ne.s32.totalorder %s73, %s74
      %p83 = scmp.eq.s32.totalorder %s21, 0
      %p84 = por %p82, %p83
      %p85 = scmp.ne.s32.totalorder %s73, %s74
      %p86 = scmp.eq.s32.totalorder %s22, 1
      %p87 = por %p85, %p86
      %p89 = scmp.ne.s32.totalorder %s74, %s88
      %p90 = scmp.eq.s32.totalorder %s22, 0
      %p91 = por %p89, %p90
      %s92 = ssub.s32 %s16, %s23
      %p93 = scmp.eq.s32.totalorder %s92, 0
      %s95 = sadd.s32 %s94, 1
      %s96 = scalar_select %p93, %s94, %s95
      %p99 = pneg %p93
      %p100 = scmp.eq.s32.totalorder %s16, 1
      %p101 = por %p99, %p100
      %p102 = scmp.ne.s32.totalorder %s94, %s97
      %p103 = scmp.eq.s32.totalorder %s16, 0
      %p104 = por %p102, %p103
      %p105 = scmp.ne.s32.totalorder %s94, %s97
      %p106 = scmp.eq.s32.totalorder %s21, 1
      %p107 = por %p105, %p106
      %p108 = scmp.ne.s32.totalorder %s97, %s98
      %p109 = scmp.eq.s32.totalorder %s21, 0
      %p110 = por %p108, %p109
      %p111 = scmp.ne.s32.totalorder %s97, %s98
      %p112 = scmp.eq.s32.totalorder %s22, 1
      %p113 = por %p111, %p112
      %p115 = scmp.ne.s32.totalorder %s98, %s114
      %p116 = scmp.eq.s32.totalorder %s22, 0
      %p117 = por %p115, %p116
      %p118 = scmp.le.s32.totalorder 1, %s16
      %p119 = scmp.lt.s32.totalorder %s16, 3
      %p120 = pnand %p118, %p119
      %p121 = pneg %p120
      // Predicated region
      $region9: #{tpu_custom_call.1} parent=5 // pred_check
        _
      $region10: #{tpu_custom_call.1} parent=5 // pred_check_branch
        %123 = sbr.rel (%p120) target = $region12
      $region11: #{tpu_custom_call.1} parent=5 // pred_region
        %s124 = ssub.s32 %s16, 1
        // Predicated region
        $region13: #{tpu_custom_call.1} parent=11 // pred_check
          %p125 = pneg %p63
        $region14: #{tpu_custom_call.1} parent=11 // pred_check_branch
          %127 = sbr.rel (%p125) target = $region16
        $region15: #{tpu_custom_call.1} parent=11 // pred_region
          %129 = vsyncadd [#allocation6], 0
          %s131 = sshll.u32 %s1, 4
          %s132 = int_to_ptr.hbm [resolvable:$true] %s131
          %s133 = sshll.u32 [#allocation5], 4
          %s134 = int_to_ptr.vmem [resolvable:$true] %s133
          %136 = dma.hbm_to_vmem [thread:$0]  %s132, 16, %s134, [#allocation6]
        $region16: #{tpu_custom_call.1} parent=11 // pred_fallthru
          _
        // Predicated region
        $region17: #{tpu_custom_call.1} parent=11 // pred_check
          %p137 = pneg %p84
        $region18: #{tpu_custom_call.1} parent=11 // pred_check_branch
          %139 = sbr.rel (%p137) target = $region20
        $region19: #{tpu_custom_call.1} parent=11 // pred_region
          %141 = vsyncadd [#allocation6], 0
          %s142 = sshll.u32 %s2, 4
          %s143 = int_to_ptr.hbm [resolvable:$true] %s142
          %s144 = sshll.u32 [#allocation7], 4
          %s145 = int_to_ptr.vmem [resolvable:$true] %s144
          %150 = dma.hbm_to_vmem [thread:$0]  %s143, 1024, %s145, [#allocation6], 64, 64, 4
        $region20: #{tpu_custom_call.1} parent=11 // pred_fallthru
          _
      $region12: #{tpu_custom_call.1} parent=5 // pred_fallthru
        _
      %p151 = scmp.lt.s32.totalorder %s16, 2
      // Predicated region
      $region21: #{tpu_custom_call.1} parent=5 // pred_check
        %p152 = pneg %p151
      $region22: #{tpu_custom_call.1} parent=5 // pred_check_branch
        %154 = sbr.rel (%p152) target = $region24
      $region23: #{tpu_custom_call.1} parent=5 // pred_region
        // Predicated region
        $region25: #{tpu_custom_call.1} parent=23 // pred_check
          %p155 = pneg %p36
        $region26: #{tpu_custom_call.1} parent=23 // pred_check_branch
          %157 = sbr.rel (%p155) target = $region28
        $region27: #{tpu_custom_call.1} parent=23 // pred_region
          %s158 = sand.u32 %s26, 1
          %s159 = scalar_lea.sflag [#allocation3], %s158
          %s160 = sand.u32 %s26, 1
          %s161 = smul.addr %s160, 16
          %s162 = scalar_lea.vmem [#allocation2], %s161
          %s163 = smul.u32 2, %s16
          %165 = vsyncadd %s159, 0
          %s166 = smul.addr %s163, 8
          %s167 = scalar_lea.hbm %s0, %s166
          %s168 = sshll.u32 %s167, 4
          %s169 = int_to_ptr.hbm [resolvable:$true] %s168
          %s170 = sshll.u32 %s162, 4
          %s171 = int_to_ptr.vmem [resolvable:$true] %s170
          %176 = dma.hbm_to_vmem [thread:$0]  %s169, 256, %s171, %s159, 128, 128, 8
        $region28: #{tpu_custom_call.1} parent=23 // pred_fallthru
          _
      $region24: #{tpu_custom_call.1} parent=5 // pred_fallthru
        _
      %p177 = scmp.le.s32.totalorder 1, %s16
      %p178 = scmp.lt.s32.totalorder %s16, 3
      %p179 = pnand %p177, %p178
      %p180 = pneg %p179
      // Predicated region
      $region29: #{tpu_custom_call.1} parent=5 // pred_check
        _
      $region30: #{tpu_custom_call.1} parent=5 // pred_check_branch
        %182 = sbr.rel (%p179) target = $region32
      $region31: #{tpu_custom_call.1} parent=5 // pred_region
        %s183 = ssub.s32 %s16, 1
        %s184 = sand.u32 %s29, 1
        %s185 = scalar_lea.sflag [#allocation3], %s184
        %s186 = sand.u32 %s29, 1
        %s187 = smul.addr %s186, 16
        %s188 = scalar_lea.vmem [#allocation2], %s187
        // Predicated region
        $region33: #{tpu_custom_call.1} parent=31 // pred_check
          %p189 = pneg %p42
        $region34: #{tpu_custom_call.1} parent=31 // pred_check_branch
          %191 = sbr.rel (%p189) target = $region36
        $region35: #{tpu_custom_call.1} parent=31 // pred_region
          %193 = dma.done %s185, 256
        $region36: #{tpu_custom_call.1} parent=31 // pred_fallthru
          _
        // Predicated region
        $region37: #{tpu_custom_call.1} parent=31 // pred_check
          %p194 = pneg %p63
        $region38: #{tpu_custom_call.1} parent=31 // pred_check_branch
          %196 = sbr.rel (%p194) target = $region40
        $region39: #{tpu_custom_call.1} parent=31 // pred_region
          %198 = dma.done [#allocation6], 16
        $region40: #{tpu_custom_call.1} parent=31 // pred_fallthru
          _
        // Predicated region
        $region41: #{tpu_custom_call.1} parent=31 // pred_check
          %p199 = pneg %p84
        $region42: #{tpu_custom_call.1} parent=31 // pred_check_branch
          %201 = sbr.rel (%p199) target = $region44
        $region43: #{tpu_custom_call.1} parent=31 // pred_region
          %203 = dma.done [#allocation6], 1024
        $region44: #{tpu_custom_call.1} parent=31 // pred_fallthru
          _
        %s204 = sand.u32 %s29, 1
        %s205 = scalar_lea.sflag [#allocation3], %s204
        %s206 = sand.u32 %s29, 1
        %s207 = smul.addr %s206, 16
        %s208 = scalar_lea.vmem [#allocation2], %s207
        %p209 = pneg %p42
        %p210 = pneg %p39
        %p211 = pneg %p63
        %p212 = pneg %p60
        %p213 = pneg %p84
        %p214 = pneg %p81
        %p215 = pneg %p110
        %p216 = pneg %p107
        %s217 = sand.u32 %s97, 1
        %s218 = scalar_lea.sflag [#allocation4], %s217
        %s219 = sand.u32 %s97, 1
        %s220 = smul.addr %s219, 16
        %s221 = scalar_lea.vmem [#allocation8], %s220
        %s222 = smul.u32 2, %s21
        %s223 = smul.u32 2, %s21
        %v224 = vld [vmem:[%s188] sm:$0xff]
        %v225 = vld [vmem:[%s188 + $0x8] sm:$0xff]
        %v226 = vld [vmem:[#allocation5] sm:$0x1]
        %v227 = vld [vmem:[#allocation7] sm:$0xf]
        %v228 = vld [vmem:[#allocation7 + $0x4] sm:$0xf]
        %v229 = vld [vmem:[#allocation7 + $0x8] sm:$0xf]
        %v230 = vld [vmem:[#allocation7 + $0xc] sm:$0xf]
        %v231 = vld [vmem:[#allocation7 + $0x10] sm:$0xf]
        %v232 = vld [vmem:[#allocation7 + $0x14] sm:$0xf]
        %v233 = vld [vmem:[#allocation7 + $0x18] sm:$0xf]
        %v234 = vld [vmem:[#allocation7 + $0x1c] sm:$0xf]
        %v235 = vld [vmem:[#allocation7 + $0x20] sm:$0xf]
        %v236 = vld [vmem:[#allocation7 + $0x24] sm:$0xf]
        %v237 = vld [vmem:[#allocation7 + $0x28] sm:$0xf]
        %v238 = vld [vmem:[#allocation7 + $0x2c] sm:$0xf]
        %v239 = vld [vmem:[#allocation7 + $0x30] sm:$0xf]
        %v240 = vld [vmem:[#allocation7 + $0x34] sm:$0xf]
        %v241 = vld [vmem:[#allocation7 + $0x38] sm:$0xf]
        %v242 = vld [vmem:[#allocation7 + $0x3c] sm:$0xf]
        %v243 = vpack.c.bf16 %v224, %v224
        %v244 = vpack.c.bf16 %v225, %v225
        %v245 = vunpack.c.l.bf16 %v243
        %v246 = vunpack.c.l.bf16 %v244
        %v247 = vsub.f32 %v224, %v245
        %v248 = vsub.f32 %v225, %v246
        %v249 = vpack.c.bf16 %v248, %v247
        %v266 = vunpack.c.l.b16 %v227
        %v267 = vunpack.c.l.b16 %v228
        %v268 = vunpack.c.l.b16 %v229
        %v269 = vunpack.c.l.b16 %v230
        %v270 = vunpack.c.l.b16 %v231
        %v271 = vunpack.c.l.b16 %v232
        %v272 = vunpack.c.l.b16 %v233
        %v273 = vunpack.c.l.b16 %v234
        %v274 = vunpack.c.l.b16 %v235
        %v275 = vunpack.c.l.b16 %v236
        %v276 = vunpack.c.l.b16 %v237
        %v277 = vunpack.c.l.b16 %v238
        %v278 = vunpack.c.l.b16 %v239
        %v279 = vunpack.c.l.b16 %v240
        %v280 = vunpack.c.l.b16 %v241
        %v281 = vunpack.c.l.b16 %v242
        %v282 = vpack.c.b16 %v267, %v266
        %v283 = vpack.c.b16 %v269, %v268
        %v284 = vpack.c.b16 %v271, %v270
        %v285 = vpack.c.b16 %v273, %v272
        %v286 = vpack.c.b16 %v275, %v274
        %v287 = vpack.c.b16 %v277, %v276
        %v288 = vpack.c.b16 %v279, %v278
        %v289 = vpack.c.b16 %v281, %v280
        %298 = vmatpush.bf16.msra.mxu0 %v289
        %299 = vmatpush.bf16.msra.mxu0 %v288
        %300 = vmatpush.bf16.msra.mxu0 %v287
        %301 = vmatpush.bf16.msra.mxu0 %v286
        %302 = vmatpush.bf16.msra.mxu0 %v285
        %303 = vmatpush.bf16.msra.mxu0 %v284
        %304 = vmatpush.bf16.msra.mxu0 %v283
        %305 = vmatpush.bf16.msra.mxu0 %v282
        %306 = vmatmul.bf16.gmra.mxu0 %v249
        %v307 = vpop.f32.mrf.mxu0
        %v308 = vadd.f32 0.0, %v307
        %v309 = vpop.f32.mrf.mxu0
        %v310 = vadd.f32 0.0, %v309
        %311 = vdwg.mxu0
        %v314 = vunpack.c.l.b16 %v243
        %v315 = vunpack.c.l.b16 %v244
        %v316 = vpack.c.b16 %v315, %v314
        %318 = vmatpush.bf16.msra.mxu0 %v289
        %319 = vmatpush.bf16.msra.mxu0 %v288
        %320 = vmatpush.bf16.msra.mxu0 %v287
        %321 = vmatpush.bf16.msra.mxu0 %v286
        %322 = vmatpush.bf16.msra.mxu0 %v285
        %323 = vmatpush.bf16.msra.mxu0 %v284
        %324 = vmatpush.bf16.msra.mxu0 %v283
        %325 = vmatpush.bf16.msra.mxu0 %v282
        %326 = vmatmul.bf16.gmra.mxu0 %v316
        %v327 = vpop.f32.mrf.mxu0
        %v328 = vadd.f32 %v308, %v327
        %v329 = vpop.f32.mrf.mxu0
        %v330 = vadd.f32 %v310, %v329
        %331 = vdwg.mxu0
        %v332 = vsub.f32 %v224, %v328
        %v333 = vsub.f32 %v225, %v330
        %v334 = vmul.f32 %v332, %v332
        %v335 = vmul.f32 %v333, %v333
        %v336 = vpack.c.bf16 %v334, %v334
        %v337 = vpack.c.bf16 %v335, %v335
        %v338 = vunpack.c.l.bf16 %v336
        %v339 = vunpack.c.l.bf16 %v337
        %v340 = vsub.f32 %v334, %v338
        %v341 = vsub.f32 %v335, %v339
        %v342 = vpack.c.bf16 %v341, %v340
        %343 = vmatpush.bf16.msra.mxu0 %v289
        %344 = vmatpush.bf16.msra.mxu0 %v288
        %345 = vmatpush.bf16.msra.mxu0 %v287
        %346 = vmatpush.bf16.msra.mxu0 %v286
        %347 = vmatpush.bf16.msra.mxu0 %v285
        %348 = vmatpush.bf16.msra.mxu0 %v284
        %349 = vmatpush.bf16.msra.mxu0 %v283
        %350 = vmatpush.bf16.msra.mxu0 %v282
        %351 = vmatmul.bf16.gmra.mxu0 %v342
        %v352 = vpop.f32.mrf.mxu0
        %v353 = vadd.f32 0.0, %v352
        %v354 = vpop.f32.mrf.mxu0
        %v355 = vadd.f32 0.0, %v354
        %356 = vdwg.mxu0
        %v359 = vunpack.c.l.b16 %v336
        %v360 = vunpack.c.l.b16 %v337
        %v361 = vpack.c.b16 %v360, %v359
        %363 = vmatpush.bf16.msra.mxu0 %v289
        %364 = vmatpush.bf16.msra.mxu0 %v288
        %365 = vmatpush.bf16.msra.mxu0 %v287
        %366 = vmatpush.bf16.msra.mxu0 %v286
        %367 = vmatpush.bf16.msra.mxu0 %v285
        %368 = vmatpush.bf16.msra.mxu0 %v284
        %369 = vmatpush.bf16.msra.mxu0 %v283
        %370 = vmatpush.bf16.msra.mxu0 %v282
        %371 = vmatmul.bf16.gmra.mxu0 %v361
        %v372 = vpop.f32.mrf.mxu0
        %v373 = vadd.f32 %v353, %v372
        %v374 = vpop.f32.mrf.mxu0
        %v375 = vadd.f32 %v355, %v374
        %376 = vdwg.mxu0
        %v377 = vadd.f32 %v373, 1e-05
        %v378 = vadd.f32 %v375, 1e-05
        %v379 = vrsqrt.pop %v377
        %v380 = vmul.f32 %v379, %v377
        %v381 = vmul.f32 %v380, %v379
        %v382 = vmul.f32 0.5, %v381
        %v383 = vsub.f32 1.5, %v382
        %v384 = vmul.f32 %v379, %v383
        %vm385 = vweird.f32 %v377
        %vm386 = vweird.f32 %v379
        %vm387 = vmor %vm385, %vm386
        %v388 = vsel %vm387, %v379, %v384
        %v389 = vrsqrt.pop %v378
        %v390 = vmul.f32 %v389, %v378
        %v391 = vmul.f32 %v390, %v389
        %v392 = vmul.f32 0.5, %v391
        %v393 = vsub.f32 1.5, %v392
        %v394 = vmul.f32 %v389, %v393
        %vm395 = vweird.f32 %v378
        %vm396 = vweird.f32 %v389
        %vm397 = vmor %vm395, %vm396
        %v398 = vsel %vm397, %v389, %v394
        %v399 = vmul.f32 %v224, %v388
        %v400 = vmul.f32 %v225, %v398
        %v402 = vperm.slane %v226, 0
        %v404 = vmul.f32 %v399, %v402
        %v405 = vmul.f32 %v400, %v402
        %406 = vst [vmem:[%s221] sm:$0xff] %v404
        %407 = vst [vmem:[%s221 + $0x8] sm:$0xff] %v405
        %s408 = sand.u32 %s97, 1
        %s409 = scalar_lea.sflag [#allocation4], %s408
        %s410 = sand.u32 %s97, 1
        %s411 = smul.addr %s410, 16
        %s412 = scalar_lea.vmem [#allocation8], %s411
        // Predicated region
        $region45: #{tpu_custom_call.1} parent=31 // pred_check
          %p413 = pneg %p107
        $region46: #{tpu_custom_call.1} parent=31 // pred_check_branch
          %415 = sbr.rel (%p413) target = $region48
        $region47: #{tpu_custom_call.1} parent=31 // pred_region
          %s416 = smul.u32 2, %s21
          %418 = vsyncadd %s409, 0
          %s419 = smul.addr %s416, 8
          %s420 = scalar_lea.hbm %s3, %s419
          %s421 = sshll.u32 %s412, 4
          %s422 = int_to_ptr.vmem [resolvable:$true] %s421
          %s423 = sshll.u32 %s420, 4
          %s424 = int_to_ptr.hbm [resolvable:$true] %s423
          %429 = dma.vmem_to_hbm [thread:$0]  %s422, 256, %s424, %s409, 128, 128, 8
        $region48: #{tpu_custom_call.1} parent=31 // pred_fallthru
          _
      $region32: #{tpu_custom_call.1} parent=5 // pred_fallthru
        _
      %p430 = scmp.le.s32.totalorder 2, %s16
      // Predicated region
      $region49: #{tpu_custom_call.1} parent=5 // pred_check
        %p431 = pneg %p430
      $region50: #{tpu_custom_call.1} parent=5 // pred_check_branch
        %433 = sbr.rel (%p431) target = $region52
      $region51: #{tpu_custom_call.1} parent=5 // pred_region
        %s434 = ssub.s32 %s16, 2
        // Predicated region
        $region53: #{tpu_custom_call.1} parent=51 // pred_check
          %p435 = pneg %p113
        $region54: #{tpu_custom_call.1} parent=51 // pred_check_branch
          %437 = sbr.rel (%p435) target = $region56
        $region55: #{tpu_custom_call.1} parent=51 // pred_region
          %s438 = sand.u32 %s98, 1
          %s439 = scalar_lea.sflag [#allocation4], %s438
          %s440 = sand.u32 %s98, 1
          %s441 = smul.addr %s440, 16
          %s442 = scalar_lea.vmem [#allocation8], %s441
          %444 = dma.done %s439, 256
        $region56: #{tpu_custom_call.1} parent=51 // pred_fallthru
          _
      $region52: #{tpu_custom_call.1} parent=5 // pred_fallthru
        _
    $region6: #{tpu_custom_call.1} parent=1 // loop_footer
      %s20 = sadd.s32 1, %s16
    $region7: #{tpu_custom_call.1} parent=1 // loop_footer_branch
      %15 = sbr.rel target = $region3
    $region8: #{tpu_custom_call.1} parent=1 // loop_exit
      _
    %445 = vsyncpa [#allocation3], 1
    %s446 = scalar_lea.sflag [#allocation3], 1
    %447 = vsyncpa %s446, 1
    %448 = vsyncpa [#allocation6], 1
    %449 = vsyncpa [#allocation4], 1
    %s450 = scalar_lea.sflag [#allocation4], 1
    %451 = vsyncpa %s450, 1

</llo_original>
